<compile_context>
chip_gen: v6e
topology: v6e:2x2x1
jax: 0.10.0
libtpu: 0.0.40
codegen_flags: <defaults>
</compile_context>

<pallas_src>
import jax
import jax.numpy as jnp
from jax.experimental import pallas as pl
from jax.experimental.pallas import tpu as pltpu


def _round_up(x, m):
    return ((x + m - 1) // m) * m


# Per-tile VMEM budget for the derived batch-tile cap (well inside even v7x's
# 32 MiB scoped / 64 MiB physical VMEM after double-buffering).
_VMEM_TILE_BUDGET_BYTES = 8 * 1024 * 1024


def linear_kernel(w_ref, b_ref, xt_ref, ot_ref):
    """One batch tile of y^T = W @ x^T + b, computed on the VPU.

    w_ref : SMEM (out_features * in_features,)  flattened weight
    b_ref : SMEM (out_features,)                bias
    xt_ref: VMEM (in_features, TN)              transposed input tile
    ot_ref: VMEM (out_features, TN)             transposed output tile
    """
    out_features, tn = ot_ref.shape
    in_features = xt_ref.shape[0]
    # out_features / in_features are tiny static ints (1 and 2) -> fully unrolled.
    # TODO(synk): if in/out features ever grow past ~8-16, switch this to a
    # single jnp.dot on the MXU (still transposed layout) per the review.
    for o in range(out_features):
        # Start the accumulator at the bias: saves one VPU add per row.
        acc = jnp.full((1, tn), b_ref[o], jnp.float32)
        for k in range(in_features):
            w_ok = w_ref[o * in_features + k]                    # SMEM scalar read
            acc = acc + w_ok * xt_ref[pl.ds(k, 1), :].astype(jnp.float32)
        ot_ref[pl.ds(o, 1), :] = acc.astype(ot_ref.dtype)


def _linear_forward(x, weight, bias):
    """y = x @ weight.T + bias via a lane-dense Pallas VPU kernel.

    x: (N, in_features), weight: (out_features, in_features), bias: (out_features,)
    Returns (N, out_features), matching nn.Linear.
    """
    n, in_features = x.shape
    out_features = weight.shape[0]

    # Batch tile: multiple of 128 lanes.  Cap derived from a VMEM budget
    # (double-buffered f32 input + output rows per lane), NOT a hard 512, so
    # N=1000 collapses to a single tile / single grid step.
    bytes_per_lane = 4 * (in_features + out_features) * 2      # f32, double-buffered
    tn_cap = max(128, (_VMEM_TILE_BUDGET_BYTES // bytes_per_lane) // 128 * 128)
    n_pad = _round_up(n, 128)
    tn = min(n_pad, tn_cap)
    n_pad = _round_up(n_pad, tn)                                # divisible by tile

    # Wrapper-side layout plumbing (fused under jit): transposed, lane-padded
    # input so the kernel reads/writes lane-dense rows.
    x_t = x.T                                                   # (in_features, n)
    if n_pad != n:
        x_t = jnp.pad(x_t, ((0, 0), (0, n_pad - n)))

    grid = (n_pad // tn,)
    flops = 2 * n_pad * in_features * out_features
    bytes_accessed = 4 * (n_pad * (in_features + out_features)
                          + in_features * out_features + out_features)

    y_t = pl.pallas_call(
        linear_kernel,
        out_shape=jax.ShapeDtypeStruct((out_features, n_pad), x.dtype),
        grid=grid,
        in_specs=[
            pl.BlockSpec(memory_space=pltpu.MemorySpace.SMEM),   # flattened weight
            pl.BlockSpec(memory_space=pltpu.MemorySpace.SMEM),   # bias
            pl.BlockSpec((in_features, tn), lambda i: (0, i)),   # x^T batch tile
        ],
        out_specs=pl.BlockSpec((out_features, tn), lambda i: (0, i)),
        compiler_params=pltpu.CompilerParams(
            # Zero-impact on v5e/v6e; lets v7x split the grid if it ever grows
            # past one tile.  With grid=(1,) nothing is duplicated.
            dimension_semantics=("parallel",),
        ),
        cost_estimate=pl.CostEstimate(
            flops=flops, transcendentals=0, bytes_accessed=bytes_accessed),
    )(weight.reshape(-1), bias, x_t)

    # Undo the layout plumbing: (out, n_pad) -> (n, out).  Under jit this is a
    # trivial slice + (for out_features==1) reshape-like transpose.
    return y_t[:, :n].T


# Single XLA launch: transpose/pad/pallas_call/slice/transpose all fuse.
linear_forward = jax.jit(_linear_forward)


if __name__ == "__main__":
    # Shapes straight from the module spec: x = randn(1000, 2), Linear(2, 1).
    num_samples = 1000
    input_size = 2
    output_size = 1

    key = jax.random.PRNGKey(0)
    kx, kw, kb = jax.random.split(key, 3)

    x = jax.random.normal(kx, (num_samples, input_size), dtype=jnp.float32)
    # Deterministic parameter init mimicking nn.Linear's U(-1/sqrt(in), 1/sqrt(in))
    bound = 1.0 / (input_size ** 0.5)
    weight = jax.random.uniform(
        kw, (output_size, input_size), dtype=jnp.float32, minval=-bound, maxval=bound
    )
    bias = jax.random.uniform(
        kb, (output_size,), dtype=jnp.float32, minval=-bound, maxval=bound
    )

    out = linear_forward(x, weight, bias)
    out = jax.block_until_ready(out)

    # Pure-JAX reference check
    ref = x @ weight.T + bias
    assert out.shape == (num_samples, output_size)
    assert jnp.allclose(out, ref, atol=1e-5, rtol=1e-5)

    print("KERNEL_OK")
</pallas_src>

<mosaic_0001>
module attributes {stable_mosaic.version = 11 : i64} {
  func.func @linear_kernel(%arg0: i32, %arg1: memref<2xf32, #tpu.memory_space<smem>>, %arg2: memref<1xf32, #tpu.memory_space<smem>>, %arg3: memref<2x1024xf32, #tpu.memory_space<vmem>>, %arg4: memref<1x1024xf32, #tpu.memory_space<vmem>>) attributes {dimension_semantics = [#tpu.dimension_semantics<parallel>], iteration_bounds = array<i64: 1>, scalar_prefetch = 0 : i64, scratch_operands = 0 : i64, tpu.core_type = #tpu.core_type<tc>, window_params = [{transform_indices = @transform_0, window_bounds = array<i64: 2>}, {transform_indices = @transform_1, window_bounds = array<i64: 1>}, {transform_indices = @transform_2, window_bounds = array<i64: 2, 1024>}, {transform_indices = @transform_3, window_bounds = array<i64: 1, 1024>}]} {
    %c0 = arith.constant 0 : index
    %0 = memref.load %arg2[%c0] : memref<1xf32, #tpu.memory_space<smem>>
    %1 = vector.broadcast %0 : f32 to vector<1x1024xf32>
    %c0_0 = arith.constant 0 : index
    %2 = memref.load %arg1[%c0_0] : memref<2xf32, #tpu.memory_space<smem>>
    %c0_1 = arith.constant 0 : index
    %c0_2 = arith.constant 0 : index
    %3 = vector.load %arg3[%c0_1, %c0_2] : memref<2x1024xf32, #tpu.memory_space<vmem>>, vector<1x1024xf32>
    %4 = vector.broadcast %2 : f32 to vector<1x1024xf32>
    %5 = arith.mulf %4, %3 : vector<1x1024xf32>
    %6 = arith.addf %1, %5 : vector<1x1024xf32>
    %c1 = arith.constant 1 : index
    %7 = memref.load %arg1[%c1] : memref<2xf32, #tpu.memory_space<smem>>
    %c1_3 = arith.constant 1 : index
    %c0_4 = arith.constant 0 : index
    %8 = vector.load %arg3[%c1_3, %c0_4] : memref<2x1024xf32, #tpu.memory_space<vmem>>, vector<1x1024xf32>
    %9 = vector.broadcast %7 : f32 to vector<1x1024xf32>
    %10 = arith.mulf %9, %8 : vector<1x1024xf32>
    %11 = arith.addf %6, %10 : vector<1x1024xf32>
    %c0_5 = arith.constant 0 : index
    %c0_6 = arith.constant 0 : index
    %12 = vector.load %arg4[%c0_5, %c0_6] : memref<1x1024xf32, #tpu.memory_space<vmem>>, vector<1x1024xf32>
    tpu.vector_store %arg4[%c0_5, %c0_6], %11 {strides = array<i32>} : memref<1x1024xf32, #tpu.memory_space<vmem>>, vector<1x1024xf32>,
    return
  }
  func.func @transform_0(%arg0: i32) -> i32 {
    %c0_i32 = arith.constant 0 : i32
    %c0_i32_0 = arith.constant 0 : i32
    return %c0_i32 : i32
  }
  func.func @transform_1(%arg0: i32) -> i32 {
    %c0_i32 = arith.constant 0 : i32
    %c0_i32_0 = arith.constant 0 : i32
    return %c0_i32 : i32
  }
  func.func @transform_2(%arg0: i32) -> (i32, i32) {
    %c0_i32 = arith.constant 0 : i32
    %c0_i32_0 = arith.constant 0 : i32
    return %c0_i32, %arg0 : i32, i32
  }
  func.func @transform_3(%arg0: i32) -> (i32, i32) {
    %c0_i32 = arith.constant 0 : i32
    %c0_i32_0 = arith.constant 0 : i32
    return %c0_i32, %arg0 : i32, i32
  }
}

</mosaic_0001>

<llo_original>
// kernel: _linear_forward.1
$region0: #{_linear_forward.1}
  #allocation0 [shape = 'u32[]', space=smem, size = 0x4, offset = 0x4, fixed_abs, tag = 'smem constant byte address 0x4 - core index']
  #allocation1 [shape = 'u32[144,128]{1,0:T(1,128)}', space=vmem, size = 0x12000, scoped, tag = 'internal scratch']
  #allocation2 [shape = 'f32[1]{0:T(128)S(6)}', space=smem, size = 0x200, scoped, tag = 'scoped memory for _linear_forward.1']
  %s0 = inlined_call_operand.vmem [shape: f32[2], index: 0, kind: input, shape index: {}]
  %s1 = inlined_call_operand.<no memory space> [shape: f32[1], index: 1, kind: input, shape index: {}]
  %s2 = inlined_call_operand.vmem [shape: f32[2,1024], index: 2, kind: input, shape index: {}]
  %s3 = inlined_call_operand.vmem [shape: f32[1,1024], index: 3, kind: output, shape index: {}]
  %s4 = sld [smem:[#allocation0]]
  $region26: #{_linear_forward.1} parent=0
    _
  %s6 = ssub.s32 1, %s4
  %s7 = scalar_select 0, %s6, %s4
  %8 = sst [smem:[#allocation2]] %s1
  $region1: #{_linear_forward.1} parent=0
    #allocation3 [shape = 'u8[512]{0}', space=smem, size = 0x200, scoped, tag = 'input window, operand 0, single buffered']
    #allocation4 [shape = 's32[1]{0}', space=sflag, size = 0x4, scoped, tag = 'scoped memory for _linear_forward.1']
    %9 = vsyncpa [#allocation4], 0
    // Predicated region
    $region2: #{_linear_forward.1} parent=1 // pred_check
      _
    $region3: #{_linear_forward.1} parent=1 // pred_check_branch
      %11 = sbr.rel (0) target = $region5
    $region4: #{_linear_forward.1} parent=1 // pred_region
      %s13 = ssub.s32 16, 16
      %14 = vsyncadd [#allocation4], %s13
      %s16 = sshll.u32 %s0, 4
      %s17 = int_to_ptr.vmem [resolvable:$true] %s16
      %19 = dma.vmem_to_smem %s17, 16, [#allocation3], [#allocation4]
    $region5: #{_linear_forward.1} parent=1 // pred_fallthru
      _
    // Predicated region
    $region6: #{_linear_forward.1} parent=1 // pred_check
      _
    $region7: #{_linear_forward.1} parent=1 // pred_check_branch
      %21 = sbr.rel (0) target = $region9
    $region8: #{_linear_forward.1} parent=1 // pred_region
      _
    $region9: #{_linear_forward.1} parent=1 // pred_fallthru
      _
    // Predicated region
    $region10: #{_linear_forward.1} parent=1 // pred_check
      _
    $region11: #{_linear_forward.1} parent=1 // pred_check_branch
      %23 = sbr.rel (0) target = $region13
    $region12: #{_linear_forward.1} parent=1 // pred_region
      _
    $region13: #{_linear_forward.1} parent=1 // pred_fallthru
      _
    // Predicated region
    $region14: #{_linear_forward.1} parent=1 // pred_check
      _
    $region15: #{_linear_forward.1} parent=1 // pred_check_branch
      %25 = sbr.rel (0) target = $region17
    $region16: #{_linear_forward.1} parent=1 // pred_region
      %26 = dma.done [#allocation4], 16
    $region17: #{_linear_forward.1} parent=1 // pred_fallthru
      _
    %27 = sfence
    %s28 = sld [smem:[#allocation2]]
    %v29 = vstv %s28
    %s30 = sld [smem:[#allocation3]]
    %v31 = vld [vmem:[%s2] ss:$2 sm:$0xff]
    %v32 = vstv %s30
    %v33 = vmul.f32 %v32, %v31
    %v34 = vadd.f32 %v29, %v33
    %s35 = sld [smem:[#allocation3 + $0x1]]
    %s36 = scalar_lea.vmem %s2, 1
    %v37 = vld [vmem:[%s36] ss:$2 sm:$0xff]
    %v38 = vstv %s35
    %v39 = vmul.f32 %v38, %v37
    %v40 = vadd.f32 %v34, %v39
    %41 = vst [vmem:[%s3] sm:$0xff] %v40
    // Predicated region
    $region18: #{_linear_forward.1} parent=1 // pred_check
      _
    $region19: #{_linear_forward.1} parent=1 // pred_check_branch
      %43 = sbr.rel (0) target = $region21
    $region20: #{_linear_forward.1} parent=1 // pred_region
      _
    $region21: #{_linear_forward.1} parent=1 // pred_fallthru
      _
    // Predicated region
    $region22: #{_linear_forward.1} parent=1 // pred_check
      _
    $region23: #{_linear_forward.1} parent=1 // pred_check_branch
      %45 = sbr.rel (0) target = $region25
    $region24: #{_linear_forward.1} parent=1 // pred_region
      _
    $region25: #{_linear_forward.1} parent=1 // pred_fallthru
      _
    %46 = vsyncpa [#allocation4], 1

</llo_original>
